<compile_context>
chip_gen: v6e
topology: v6e:2x2x1
jax: 0.10.0
libtpu: 0.0.40
codegen_flags: <defaults>
</compile_context>

<pallas_src>
import functools
import math

import jax
import jax.numpy as jnp
from jax import lax
from jax.experimental import pallas as pl
from jax.experimental.pallas import tpu as pltpu

_LANE = 128
_SUBLANE = 8
_TARGET_TILE_BYTES = 8 * 1024 * 1024   # per x block (Pallas double-buffers it)
_VMEM_LIMIT_BYTES = 48 * 1024 * 1024   # <= v7x 64 MiB physical; ample on v5e/v6e


def _mean_prior_kernel(x_ref, mean_ref, out_ref, acc_ref, *,
                       rows_total: int, tile_b: int, steps_per_shard: int,
                       grid_b: int, n_groups: int, gw: int, row_fold: int,
                       need_mask: bool, need_dup: bool):
    c = pl.program_id(0)            # shard (TensorCore) index  -- "parallel"
    i = pl.program_id(1)            # row-block index in shard  -- "arbitrary"
    gb = c * steps_per_shard + i    # global row-block index (may overrun grid_b)

    @pl.when(i == 0)
    def _init():
        acc_ref[...] = jnp.zeros_like(acc_ref)

    # (1, gw) mean slices: loaded once per step, shared by both pl.when branches.
    m_groups = [mean_ref[:, g * gw:(g + 1) * gw].astype(jnp.float32)
                for g in range(n_groups)]

    def accumulate(mask_rows: bool):
        if mask_rows:
            row = gb * tile_b + lax.broadcasted_iota(jnp.int32, (tile_b, 1), 0)
            valid = row < rows_total
        local = jnp.zeros(acc_ref.shape, jnp.float32)
        for g in range(n_groups):
            lo = g * gw                                      # static, 128-aligned
            xg = x_ref[:, lo:lo + gw].astype(jnp.float32)    # (tile_b, gw) stream
            d = xg - m_groups[g]
            d2 = d * d                                       # VPU only
            if mask_rows:
                d2 = jnp.where(valid, d2, jnp.float32(0.0))  # before acc update
            if row_fold > 1:
                # Fold sublane groups (rows in chunks of 8) with vreg adds.
                d2 = d2.reshape(row_fold, tile_b // row_fold, gw).sum(axis=0)
            local = local + d2
        acc_ref[...] += local                                # tiny (<=4 KiB) RMW

    if need_mask:
        # Ragged trailing block: mask only there; hot path stays mask-free.
        pl.when(gb < grid_b - 1)(lambda: accumulate(False))
        pl.when(gb == grid_b - 1)(lambda: accumulate(True))
    elif need_dup:
        # grid_b not divisible by num_shards: skip duplicated trailing blocks.
        pl.when(gb < grid_b)(lambda: accumulate(False))
    else:
        accumulate(False)

    @pl.when(i == steps_per_shard - 1)
    def _finalize():
        # Single, tiny cross-lane/sublane reduce per shard.
        out_ref[...] = jnp.full((1, 1, 1), jnp.sum(acc_ref[...]),
                                dtype=out_ref.dtype)


def mean_prior(x: jax.Array, mean: jax.Array, *,
               tile_b: int | None = None,
               num_shards: int | None = None,
               buffers: int = 2) -> jax.Array:
    """Pallas implementation of MeanPrior.forward.

    x:    (B, *mean.shape) array (any float dtype; accumulation in f32)
    mean: registered-buffer array, broadcast as (1, *mean.shape)
    returns scalar float32: sum((x - mean)^2) / B
    """
    B = x.shape[0]
    D = math.prod(x.shape[1:]) if len(x.shape) > 1 else 1
    assert mean.size == D, "mean must match the trailing dims of x"

    x2 = x.reshape(B, D)
    mean2 = mean.reshape(1, D)

    itemsize = jnp.dtype(x2.dtype).itemsize
    row_bytes = max(D * itemsize, 1)

    if tile_b is None:
        cap = (_TARGET_TILE_BYTES // row_bytes) // _SUBLANE * _SUBLANE
        cap = max(_SUBLANE, cap)
        # TODO(synk): for very large D (row_bytes in the MiB range) add a second
        # grid axis over D instead of letting tile_b degenerate below ~64 rows.
        tile_b = B if B <= cap else cap
    assert tile_b == B or tile_b % _SUBLANE == 0, \
        "tile_b must equal B or be a multiple of 8"

    grid_b = pl.cdiv(B, tile_b)
    need_mask = (B % tile_b) != 0

    if num_shards is None:
        # Split rows across TensorCores (v7x) when it is free; avoid a wasted
        # duplicate-block DMA for small odd grids.  Harmless on 1-TC chips.
        num_shards = 2 if (grid_b >= 2 and (grid_b % 2 == 0 or grid_b >= 8)) else 1
    num_shards = max(1, min(num_shards, grid_b))
    steps_per_shard = pl.cdiv(grid_b, num_shards)
    need_dup = steps_per_shard * num_shards != grid_b

    fold_lanes = (D % _LANE == 0) and (D >= _LANE)
    gw = _LANE if fold_lanes else D
    n_groups = D // _LANE if fold_lanes else 1
    row_fold = tile_b // _SUBLANE if tile_b % _SUBLANE == 0 else 1
    acc_shape = (tile_b // row_fold, gw)          # (8, gw) whenever tile_b % 8 == 0

    if need_dup:
        x_index = lambda c, i: (jnp.minimum(c * steps_per_shard + i, grid_b - 1), 0)
    else:
        x_index = lambda c, i: (c * steps_per_shard + i, 0)

    x_spec_kwargs = {}
    if buffers != 2:                               # sweepable: pl.Buffered(3)
        x_spec_kwargs["pipeline_mode"] = pl.Buffered(buffers)
    x_spec = pl.BlockSpec((tile_b, D), x_index, **x_spec_kwargs)

    kernel = functools.partial(
        _mean_prior_kernel,
        rows_total=B, tile_b=tile_b, steps_per_shard=steps_per_shard,
        grid_b=grid_b, n_groups=n_groups, gw=gw, row_fold=row_fold,
        need_mask=need_mask, need_dup=need_dup)

    cost = pl.CostEstimate(
        flops=3 * B * D,
        transcendentals=0,
        bytes_accessed=B * D * itemsize
        + D * jnp.dtype(mean2.dtype).itemsize
        + num_shards * 4)

    partial_sums = pl.pallas_call(
        kernel,
        out_shape=jax.ShapeDtypeStruct((num_shards, 1, 1), jnp.float32),
        grid_spec=pltpu.PrefetchScalarGridSpec(
            num_scalar_prefetch=0,
            grid=(num_shards, steps_per_shard),
            in_specs=[
                x_spec,                                       # streamed x rows
                pl.BlockSpec((1, D), lambda c, i: (0, 0)),    # VMEM-resident mean
            ],
            out_specs=pl.BlockSpec((1, 1, 1), lambda c, i: (c, 0, 0)),
            scratch_shapes=[pltpu.VMEM(acc_shape, jnp.float32)],
        ),
        compiler_params=pltpu.CompilerParams(
            dimension_semantics=("parallel", "arbitrary"),
            vmem_limit_bytes=_VMEM_LIMIT_BYTES,
        ),
        cost_estimate=cost,
    )(x2, mean2)

    return jnp.sum(partial_sums) / B


if __name__ == "__main__":
    key = jax.random.PRNGKey(0)
    k_x, k_m, k_x2, k_x3 = jax.random.split(key, 4)

    # module_input (B, 4, 64); registered mean buffer has shape (4, 64).
    B, C, H = 2, 4, 64
    x = jax.random.normal(k_x, (B, C, H), dtype=jnp.float32)
    mean = jax.random.normal(k_m, (C, H), dtype=jnp.float32) * 0.1

    result = jax.block_until_ready(mean_prior(x, mean))
    ref = jnp.sum((x - mean[None]) ** 2) / B
    assert jnp.allclose(result, ref, rtol=1e-5, atol=1e-5), (result, ref)

    # Multi-block grid: 2 shards with an odd block count (duplicate-block skip)
    # and a ragged trailing block (last-step-only mask path).
    B2 = 20
    x_big = jax.random.normal(k_x2, (B2, C, H), dtype=jnp.float32)
    result2 = jax.block_until_ready(mean_prior(x_big, mean, tile_b=8, num_shards=2))
    ref2 = jnp.sum((x_big - mean[None]) ** 2) / B2
    assert jnp.allclose(result2, ref2, rtol=1e-5, atol=1e-5), (result2, ref2)

    # Even shard split + bf16 input streamed with per-group f32 upcast.
    B3 = 32
    x_bf = jax.random.normal(k_x3, (B3, C, H), dtype=jnp.float32).astype(jnp.bfloat16)
    result3 = jax.block_until_ready(mean_prior(x_bf, mean, tile_b=16, num_shards=2))
    ref3 = jnp.sum((x_bf.astype(jnp.float32) - mean[None]) ** 2) / B3
    assert jnp.allclose(result3, ref3, rtol=1e-4, atol=1e-4), (result3, ref3)

    print("KERNEL_OK")
</pallas_src>

<mosaic_0001>
module attributes {stable_mosaic.version = 11 : i64} {
  func.func @_mean_prior_kernel(%arg0: i32, %arg1: i32, %arg2: memref<2x256xf32, #tpu.memory_space<vmem>>, %arg3: memref<1x256xf32, #tpu.memory_space<vmem>>, %arg4: memref<1x1x1xf32, #tpu.memory_space<vmem>>, %arg5: memref<2x128xf32, #tpu.memory_space<vmem>>) attributes {dimension_semantics = [#tpu.dimension_semantics<parallel>, #tpu.dimension_semantics<arbitrary>], iteration_bounds = array<i64: 1, 1>, scalar_prefetch = 0 : i64, scratch_operands = 1 : i64, tpu.core_type = #tpu.core_type<tc>, window_params = [{transform_indices = @transform_0, window_bounds = array<i64: 2, 256>}, {pipeline_mode = #tpu.pipeline_mode<synchronous>, transform_indices = @transform_1, window_bounds = array<i64: 1, 256>}, {transform_indices = @transform_2, window_bounds = array<i64: 1, 1, 1>}]} {
    %c0_i32 = arith.constant 0 : i32
    %0 = arith.cmpi eq, %arg1, %c0_i32 : i32
    %1 = arith.extui %0 : i1 to i32
    %c0_i32_0 = arith.constant 0 : i32
    %2 = arith.cmpi ne, %1, %c0_i32_0 : i32
    scf.if %2 {
      %cst_13 = arith.constant 0.000000e+00 : f32
      %22 = vector.broadcast %cst_13 : f32 to vector<2x128xf32>
      %c0_14 = arith.constant 0 : index
      %c0_15 = arith.constant 0 : index
      %23 = vector.load %arg5[%c0_14, %c0_15] : memref<2x128xf32, #tpu.memory_space<vmem>>, vector<2x128xf32>
      tpu.vector_store %arg5[%c0_14, %c0_15], %22 {strides = array<i32>} : memref<2x128xf32, #tpu.memory_space<vmem>>, vector<2x128xf32>,
    } else {
    }
    %c0 = arith.constant 0 : index
    %c0_1 = arith.constant 0 : index
    %3 = vector.load %arg3[%c0, %c0_1] : memref<1x256xf32, #tpu.memory_space<vmem>>, vector<1x128xf32>
    %c0_2 = arith.constant 0 : index
    %c128 = arith.constant 128 : index
    %4 = vector.load %arg3[%c0_2, %c128] : memref<1x256xf32, #tpu.memory_space<vmem>>, vector<1x128xf32>
    %cst = arith.constant 0.000000e+00 : f32
    %5 = vector.broadcast %cst : f32 to vector<2x128xf32>
    %c0_3 = arith.constant 0 : index
    %c0_4 = arith.constant 0 : index
    %6 = vector.load %arg2[%c0_3, %c0_4] : memref<2x256xf32, #tpu.memory_space<vmem>>, vector<2x128xf32>
    %7 = vector.broadcast %3 : vector<1x128xf32> to vector<2x128xf32>
    %8 = arith.subf %6, %7 : vector<2x128xf32>
    %9 = arith.mulf %8, %8 : vector<2x128xf32>
    %10 = arith.addf %5, %9 : vector<2x128xf32>
    %c0_5 = arith.constant 0 : index
    %c128_6 = arith.constant 128 : index
    %11 = vector.load %arg2[%c0_5, %c128_6] : memref<2x256xf32, #tpu.memory_space<vmem>>, vector<2x128xf32>
    %12 = vector.broadcast %4 : vector<1x128xf32> to vector<2x128xf32>
    %13 = arith.subf %11, %12 : vector<2x128xf32>
    %14 = arith.mulf %13, %13 : vector<2x128xf32>
    %15 = arith.addf %10, %14 : vector<2x128xf32>
    %c0_7 = arith.constant 0 : index
    %c0_8 = arith.constant 0 : index
    %16 = vector.load %arg5[%c0_7, %c0_8] : memref<2x128xf32, #tpu.memory_space<vmem>>, vector<2x128xf32>
    %17 = arith.addf %16, %15 : vector<2x128xf32>
    %c0_9 = arith.constant 0 : index
    %c0_10 = arith.constant 0 : index
    %18 = vector.load %arg5[%c0_9, %c0_10] : memref<2x128xf32, #tpu.memory_space<vmem>>, vector<2x128xf32>
    tpu.vector_store %arg5[%c0_9, %c0_10], %17 {strides = array<i32>} : memref<2x128xf32, #tpu.memory_space<vmem>>, vector<2x128xf32>,
    %c0_i32_11 = arith.constant 0 : i32
    %19 = arith.cmpi eq, %arg1, %c0_i32_11 : i32
    %20 = arith.extui %19 : i1 to i32
    %c0_i32_12 = arith.constant 0 : i32
    %21 = arith.cmpi ne, %20, %c0_i32_12 : i32
    scf.if %21 {
      %c0_13 = arith.constant 0 : index
      %c0_14 = arith.constant 0 : index
      %22 = vector.load %arg5[%c0_13, %c0_14] : memref<2x128xf32, #tpu.memory_space<vmem>>, vector<2x128xf32>
      %23 = vector.shape_cast %22 : vector<2x128xf32> to vector<1x2x128xf32>
      %cst_15 = arith.constant dense<0.000000e+00> : vector<1xf32>
      %24 = vector.multi_reduction <add>, %23, %cst_15 [1, 2] : vector<1x2x128xf32> to vector<1xf32>
      %25 = vector.shape_cast %24 : vector<1xf32> to vector<1x1x1xf32>
      %26 = vector.extract %25[0, 0, 0] : f32 from vector<1x1x1xf32>
      %27 = vector.broadcast %26 : f32 to vector<1x1x1xf32>
      %c0_16 = arith.constant 0 : index
      %c0_17 = arith.constant 0 : index
      %c0_18 = arith.constant 0 : index
      %28 = vector.load %arg4[%c0_16, %c0_17, %c0_18] : memref<1x1x1xf32, #tpu.memory_space<vmem>>, vector<1x1x1xf32>
      tpu.vector_store %arg4[%c0_16, %c0_17, %c0_18], %27 {strides = array<i32>} : memref<1x1x1xf32, #tpu.memory_space<vmem>>, vector<1x1x1xf32>,
    } else {
    }
    return
  }
  func.func @transform_0(%arg0: i32, %arg1: i32) -> (i32, i32) {
    %c1_i32 = arith.constant 1 : i32
    %0 = arith.muli %arg0, %c1_i32 : i32
    %1 = arith.addi %0, %arg1 : i32
    %c0_i32 = arith.constant 0 : i32
    %c0_i32_0 = arith.constant 0 : i32
    return %1, %c0_i32 : i32, i32
  }
  func.func @transform_1(%arg0: i32, %arg1: i32) -> (i32, i32) {
    %c0_i32 = arith.constant 0 : i32
    %c0_i32_0 = arith.constant 0 : i32
    %c0_i32_1 = arith.constant 0 : i32
    return %c0_i32, %c0_i32_0 : i32, i32
  }
  func.func @transform_2(%arg0: i32, %arg1: i32) -> (i32, i32, i32) {
    %c0_i32 = arith.constant 0 : i32
    %c0_i32_0 = arith.constant 0 : i32
    %c0_i32_1 = arith.constant 0 : i32
    return %arg0, %c0_i32, %c0_i32_0 : i32, i32, i32
  }
}

</mosaic_0001>

<llo_original>
// kernel: tpu_custom_call.1
$region0: #{tpu_custom_call.1}
  #allocation0 [shape = 'u32[]', space=smem, size = 0x4, offset = 0x4, fixed_abs, tag = 'smem constant byte address 0x4 - core index']
  #allocation1 [shape = 'u32[144,128]{1,0:T(1,128)}', space=vmem, size = 0x12000, scoped, tag = 'internal scratch']
  #allocation2 [shape = 'f32[2,128]{1,0:T(2,128)}', space=vmem, size = 0x400, scoped, tag = 'scratch operand']
  %s0 = inlined_call_operand.hbm [shape: f32[2,256], index: 0, kind: input, shape index: {}]
  %s1 = inlined_call_operand.hbm [shape: f32[1,256], index: 1, kind: input, shape index: {}]
  %s2 = inlined_call_operand.hbm [shape: f32[1,1,1], index: 2, kind: output, shape index: {}]
  %s3 = sld [smem:[#allocation0]]
  $region34: #{tpu_custom_call.1} parent=0
    _
  %s5 = ssub.s32 1, %s3
  %s6 = scalar_select 0, %s5, %s3
  $region1: #{tpu_custom_call.1} parent=0
    #allocation3 [shape = 'u8[2048]{0}', space=vmem, size = 0x800, scoped, tag = 'input window, operand 0, single buffered']
    #allocation4 [shape = 's32[1]{0}', space=sflag, size = 0x4, scoped, tag = 'scoped memory for tpu_custom_call.1']
    #allocation5 [shape = 's32[1]{0}', space=sflag, size = 0x4, scoped, tag = 'scoped memory for tpu_custom_call.1']
    #allocation6 [shape = 'u8[1024]{0}', space=vmem, size = 0x400, scoped, tag = 'input window, operand 1, single buffered']
    #allocation7 [shape = 's32[1]{0}', space=sflag, size = 0x4, scoped, tag = 'scoped memory for tpu_custom_call.1']
    #allocation8 [shape = 'u8[512]{0}', space=vmem, size = 0x400, scoped, tag = 'output window, operand 0, single buffered']
    %7 = vsyncpa [#allocation4], 0
    %8 = vsyncpa [#allocation7], 0
    %9 = vsyncpa [#allocation5], 0
    // Predicated region
    $region2: #{tpu_custom_call.1} parent=1 // pred_check
      _
    $region3: #{tpu_custom_call.1} parent=1 // pred_check_branch
      %11 = sbr.rel (0) target = $region5
    $region4: #{tpu_custom_call.1} parent=1 // pred_region
      %s12 = sadd.s32 0, 0
      %s14 = ssub.s32 64, 64
      %15 = vsyncadd [#allocation4], %s14
      %s16 = smul.addr %s12, 2
      %s17 = smul.addr %s16, 32
      %s18 = scalar_lea.hbm %s0, %s17
      %s20 = sshll.u32 [#allocation3], 4
      %s21 = int_to_ptr.vmem [resolvable:$true] %s20
      %23 = dma.hbm_to_vmem [thread:$0]  %s18, 64, %s21, [#allocation4]
    $region5: #{tpu_custom_call.1} parent=1 // pred_fallthru
      _
    // Predicated region
    $region6: #{tpu_custom_call.1} parent=1 // pred_check
      _
    $region7: #{tpu_custom_call.1} parent=1 // pred_check_branch
      %25 = sbr.rel (0) target = $region9
    $region8: #{tpu_custom_call.1} parent=1 // pred_region
      %s27 = ssub.s32 32, 32
      %28 = vsyncadd [#allocation7], %s27
      %s30 = sshll.u32 [#allocation6], 4
      %s31 = int_to_ptr.vmem [resolvable:$true] %s30
      %33 = dma.hbm_to_vmem [thread:$0]  %s1, 32, %s31, [#allocation7]
    $region9: #{tpu_custom_call.1} parent=1 // pred_fallthru
      _
    // Predicated region
    $region10: #{tpu_custom_call.1} parent=1 // pred_check
      _
    $region11: #{tpu_custom_call.1} parent=1 // pred_check_branch
      %35 = sbr.rel (0) target = $region13
    $region12: #{tpu_custom_call.1} parent=1 // pred_region
      %36 = dma.done [#allocation4], 64
    $region13: #{tpu_custom_call.1} parent=1 // pred_fallthru
      _
    // Predicated region
    $region14: #{tpu_custom_call.1} parent=1 // pred_check
      _
    $region15: #{tpu_custom_call.1} parent=1 // pred_check_branch
      %38 = sbr.rel (0) target = $region17
    $region16: #{tpu_custom_call.1} parent=1 // pred_region
      %39 = dma.done [#allocation7], 32
    $region17: #{tpu_custom_call.1} parent=1 // pred_fallthru
      _
    %s40 = sadd.s32 0, 0
    %p41 = scmp.eq.s32.totalorder 0, 0
    // Predicated region
    $region18: #{tpu_custom_call.1} parent=1 // pred_check
      %p42 = pneg %p41
    $region19: #{tpu_custom_call.1} parent=1 // pred_check_branch
      %44 = sbr.rel (%p42) target = $region21
    $region20: #{tpu_custom_call.1} parent=1 // pred_region
      %45 = vst [vmem:[#allocation2] sm:$0x3] 0.0
    $region21: #{tpu_custom_call.1} parent=1 // pred_fallthru
      _
    %v46 = vld [vmem:[#allocation6] sm:$0x1]
    %v47 = vld [vmem:[#allocation6 + $0x1] sm:$0x1]
    %v48 = vld [vmem:[#allocation3] sm:$0x3]
    %v50 = vlaneseq
    %v51 = vshrl.u32 %v50, 7
    %v52 = vsub.s32 0, %v51
    %v53 = vrot.slane %v46, %v52
    %v55 = vsub.f32 %v48, %v53
    %v56 = vmul.f32 %v55, %v55
    %v57 = vadd.f32 %v56, 0.0
    %v58 = vld [vmem:[#allocation3 + $0x2] sm:$0x3]
    %v60 = vlaneseq
    %v61 = vshrl.u32 %v60, 7
    %v62 = vsub.s32 0, %v61
    %v63 = vrot.slane %v47, %v62
    %v65 = vsub.f32 %v58, %v63
    %v66 = vmul.f32 %v65, %v65
    %v67 = vadd.f32 %v57, %v66
    %v68 = vld [vmem:[#allocation2] sm:$0x3]
    %v69 = vadd.f32 %v68, %v67
    %70 = vst [vmem:[#allocation2] sm:$0x3] %v69
    // Predicated region
    $region22: #{tpu_custom_call.1} parent=1 // pred_check
      %p71 = pneg %p41
    $region23: #{tpu_custom_call.1} parent=1 // pred_check_branch
      %73 = sbr.rel (%p71) target = $region25
    $region24: #{tpu_custom_call.1} parent=1 // pred_region
      %v74 = vld [vmem:[#allocation2] sm:$0x3]
      %vm75 = vcmask 1041408
      %v76 = vsel %vm75, %v74, 0.0
      %77 = vadd.xlane.f32.xlu0 %v76
      %v78 = vpop.xlane.xlu0 %77
      %v79 = vrot.slane %v78, 4
      %v80 = vadd.f32 %v78, %v79
      %v81 = vrot.slane %v80, 2
      %v82 = vadd.f32 %v80, %v81
      %v83 = vrot.slane %v82, 1
      %v84 = vadd.f32 %v82, %v83
      %s85 = vtos %v84
      %v86 = vstv %s85
      %vm87 = vcmask 0
      %88 = vst.msk [vmem:[#allocation8] sm:$0x1] %vm87, %v86
    $region25: #{tpu_custom_call.1} parent=1 // pred_fallthru
      _
    // Predicated region
    $region26: #{tpu_custom_call.1} parent=1 // pred_check
      _
    $region27: #{tpu_custom_call.1} parent=1 // pred_check_branch
      %90 = sbr.rel (0) target = $region29
    $region28: #{tpu_custom_call.1} parent=1 // pred_region
      %s92 = ssub.s32 16, 16
      %93 = vsyncadd [#allocation5], %s92
      %s95 = sshll.u32 [#allocation8], 4
      %s96 = int_to_ptr.vmem [resolvable:$true] %s95
      %98 = dma.vmem_to_hbm [thread:$0]  %s96, 16, %s2, [#allocation5]
    $region29: #{tpu_custom_call.1} parent=1 // pred_fallthru
      _
    // Predicated region
    $region30: #{tpu_custom_call.1} parent=1 // pred_check
      _
    $region31: #{tpu_custom_call.1} parent=1 // pred_check_branch
      %100 = sbr.rel (0) target = $region33
    $region32: #{tpu_custom_call.1} parent=1 // pred_region
      %101 = dma.done [#allocation5], 16
    $region33: #{tpu_custom_call.1} parent=1 // pred_fallthru
      _
    %102 = vsyncpa [#allocation4], 1
    %103 = vsyncpa [#allocation7], 1
    %104 = vsyncpa [#allocation5], 1

</llo_original>
